<compile_context>
chip_gen: v6e
topology: v6e:2x2x1
jax: 0.10.0
libtpu: 0.0.40
codegen_flags: <defaults>
</compile_context>

<pallas_src>
import functools

import jax
import jax.numpy as jnp
from jax.experimental import pallas as pl
from jax.experimental.pallas import tpu as pltpu

LANE = 128      # TPU vreg lane width; all padded feature dims use this.
HIDDEN = 64     # LinearVAE's HIDDEN constant (zero-padded to LANE in weights).


def _round_up(n, m):
    return ((n + m - 1) // m) * m


def _lane_offsets(features, reconstruct_size):
    """Lane placement of (recon | mu | log_var) in the packed output slab."""
    if reconstruct_size + 2 * features <= LANE:
        # single 128-lane slab: recon@[0,R), mu@[R,R+F), log_var@[R+F,R+2F)
        return reconstruct_size, reconstruct_size + features, LANE
    # fallback: three 128-lane slabs, natural (offset-0) placement
    return 0, 0, 3 * LANE


def _vae_kernel(in_ref, w_e1_ref, w_e2_ref, w_d1z_ref, w_d1x_ref,
                w_d2_ref, w_d3_ref, b_ref, out_ref, *,
                features, mu_off, lv_off, single_slab):
    f32 = jnp.float32
    merged = in_ref[...]                      # (TB, F+in+extra) = [eps|x|xp]

    # ---- encoder: Linear -> ReLU -> Linear ----
    # x's weight rows are embedded in w_e1 (eps/xp rows are zero), so the
    # merged tile feeds the matmul directly - no in-kernel slicing of x.
    h = jnp.dot(merged, w_e1_ref[...], preferred_element_type=f32) + b_ref[0:1, :]
    h = jnp.maximum(h, 0.0)                   # (TB, 128)

    # (TB, 256) = [mu_half | log_var_half]; inside each half the meaningful
    # columns were pre-placed at mu_off / lv_off by pack_params so the final
    # packed store needs no lane shuffling.
    enc = jnp.dot(h, w_e2_ref[...], preferred_element_type=f32)
    mu = enc[:, :LANE] + b_ref[1:2, :]        # values at [mu_off, mu_off+F)
    log_var = enc[:, LANE:] + b_ref[2:3, :]   # values at [lv_off, lv_off+F)

    # ---- reparameterize on narrow (TB, F) vregs: z = mu + eps * exp(.5*lv) ----
    eps = merged[:, :features]
    std_n = jnp.exp(0.5 * log_var[:, lv_off:lv_off + features])
    z_n = mu[:, mu_off:mu_off + features] + eps * std_n        # (TB, F)

    # ---- decoder: Linear -> ReLU -> Linear -> ReLU -> Linear ----
    # cat([z, xp], -1) @ W_d1 == z @ W_d1[:F] + xp @ W_d1[F:]; the xp rows of
    # W_d1 are embedded in w_d1x (zero rows for eps/x), so merged feeds it.
    d = (jnp.dot(z_n, w_d1z_ref[...], preferred_element_type=f32)
         + jnp.dot(merged, w_d1x_ref[...], preferred_element_type=f32)
         + b_ref[3:4, :])
    d = jnp.maximum(d, 0.0)
    d = jnp.dot(d, w_d2_ref[...], preferred_element_type=f32) + b_ref[4:5, :]
    d = jnp.maximum(d, 0.0)
    recon = jnp.dot(d, w_d3_ref[...], preferred_element_type=f32) + b_ref[5:6, :]

    if single_slab:
        # recon / mu / log_var occupy disjoint lane ranges (zeros elsewhere),
        # so the packed slab is a plain sum -> one unmasked 128-lane store.
        out_ref[...] = recon + mu + log_var
    else:
        out_ref[:, 0 * LANE:1 * LANE] = recon
        out_ref[:, 1 * LANE:2 * LANE] = mu
        out_ref[:, 2 * LANE:3 * LANE] = log_var


@functools.partial(jax.jit,
                   static_argnames=("features", "reconstruct_size", "tile_b"))
def linear_vae_forward(x, xp, eps, params, *, features, reconstruct_size,
                       tile_b=512):
    """Runs the whole LinearVAE forward in one pipelined Pallas kernel."""
    B, input_size = x.shape
    extra = xp.shape[1]
    assert features <= LANE and reconstruct_size <= LANE and HIDDEN <= LANE
    assert eps.shape == (B, features)

    mu_off, lv_off, out_lanes = _lane_offsets(features, reconstruct_size)
    single_slab = out_lanes == LANE

    # Batch tile: multiple of 8 (sublane), big enough to amortize per-step
    # overhead, and split so the grid has >=2 steps when possible (v7x
    # megacore sharding of the "parallel" axis; neutral on v5e/v6e).
    tile_b = max(8, _round_up(int(tile_b), 8))
    b8 = _round_up(B, 8)
    tb = min(tile_b, b8)
    if b8 > 8:
        tb = min(tb, _round_up(b8 // 2, 8))
    tb = max(8, _round_up(tb, 8))
    b_pad = _round_up(b8, tb)

    din = features + input_size + extra
    merged = jnp.concatenate([eps.astype(jnp.float32),
                              x.astype(jnp.float32),
                              xp.astype(jnp.float32)], axis=-1)
    merged = jnp.pad(merged, ((0, b_pad - B), (0, 0)))

    batch_map = lambda i: (i, 0)
    const_map = lambda i: (0, 0)

    in_specs = [
        pl.BlockSpec((tb, din), batch_map),             # merged [eps|x|xp] tile
        pl.BlockSpec((din, LANE), const_map),           # W_enc1 (x rows embedded)
        pl.BlockSpec((LANE, 2 * LANE), const_map),      # W_enc2 [mu | log_var]
        pl.BlockSpec((features, LANE), const_map),      # W_dec1 (z rows)
        pl.BlockSpec((din, LANE), const_map),           # W_dec1 (xp rows embedded)
        pl.BlockSpec((LANE, LANE), const_map),          # W_dec2
        pl.BlockSpec((LANE, LANE), const_map),          # W_dec3
        pl.BlockSpec((6, LANE), const_map),             # stacked biases
    ]
    out_specs = pl.BlockSpec((tb, out_lanes), batch_map)

    kernel = functools.partial(_vae_kernel, features=features, mu_off=mu_off,
                               lv_off=lv_off, single_slab=single_slab)

    packed = pl.pallas_call(
        kernel,
        out_shape=jax.ShapeDtypeStruct((b_pad, out_lanes), jnp.float32),
        grid=(b_pad // tb,),
        in_specs=in_specs,
        out_specs=out_specs,
        compiler_params=pltpu.CompilerParams(
            dimension_semantics=("parallel",),
            vmem_limit_bytes=32 * 1024 * 1024,
        ),
    )(merged, params["w_e1"], params["w_e2"], params["w_d1z"],
      params["w_d1x"], params["w_d2"], params["w_d3"], params["b_stack"])

    if single_slab:
        recon = packed[:B, :reconstruct_size]
        mu = packed[:B, mu_off:mu_off + features]
        log_var = packed[:B, lv_off:lv_off + features]
    else:
        recon = packed[:B, :reconstruct_size]
        mu = packed[:B, LANE:LANE + features]
        log_var = packed[:B, 2 * LANE:2 * LANE + features]
    return recon, mu, log_var


def init_raw_params(key, input_size, features, extra_decoder_input,
                    reconstruct_size, hidden=HIDDEN):
    """Deterministic parameter init; weights stored as (in, out)."""
    ks = jax.random.split(key, 10)

    def lin(kw, kb, fan_in, fan_out):
        bound = 1.0 / jnp.sqrt(jnp.float32(fan_in))
        w = jax.random.uniform(kw, (fan_in, fan_out), jnp.float32, -bound, bound)
        b = jax.random.uniform(kb, (1, fan_out), jnp.float32, -bound, bound)
        return w, b

    ew1, eb1 = lin(ks[0], ks[1], input_size, hidden)
    ew2, eb2 = lin(ks[2], ks[3], hidden, 2 * features)
    dw1, db1 = lin(ks[4], ks[5], features + extra_decoder_input, hidden)
    dw2, db2 = lin(ks[6], ks[7], hidden, hidden)
    dw3, db3 = lin(ks[8], ks[9], hidden, reconstruct_size)
    return dict(ew1=ew1, eb1=eb1, ew2=ew2, eb2=eb2,
                dw1=dw1, db1=db1, dw2=dw2, db2=db2, dw3=dw3, db3=db3)


def pack_params(raw):
    """Zero-pad / split / lane-place the raw (in, out) weights into the layout
    consumed by the kernel.  Invariants the kernel relies on:
      * x / xp weight rows sit at their offsets in the merged [eps|x|xp] input
        (all other rows zero), so merged @ W is exactly x @ ew1 / xp @ dw1[F:].
      * mu / log_var columns (and their bias lanes) sit at mu_off / lv_off of
        their 128-lane halves; every other column / lane is zero, so the three
        output pieces occupy disjoint lanes and sum into one packed slab.
    """
    input_size, hidden = raw["ew1"].shape
    features = raw["ew2"].shape[1] // 2
    extra = raw["dw1"].shape[0] - features
    reconstruct_size = raw["dw3"].shape[1]
    din = features + input_size + extra
    mu_off, lv_off, _ = _lane_offsets(features, reconstruct_size)

    def place(w, row_off, col_off, rows, cols):
        out = jnp.zeros((rows, cols), jnp.float32)
        return out.at[row_off:row_off + w.shape[0],
                      col_off:col_off + w.shape[1]].set(w)

    w_e1 = place(raw["ew1"], features, 0, din, LANE)
    w_e2 = jnp.concatenate([
        place(raw["ew2"][:, :features], 0, mu_off, LANE, LANE),
        place(raw["ew2"][:, features:], 0, lv_off, LANE, LANE),
    ], axis=1)                                                  # (128, 256)
    w_d1z = place(raw["dw1"][:features, :], 0, 0, features, LANE)
    w_d1x = place(raw["dw1"][features:, :], features + input_size, 0, din, LANE)
    w_d2 = place(raw["dw2"], 0, 0, LANE, LANE)
    w_d3 = place(raw["dw3"], 0, 0, LANE, LANE)

    b_stack = jnp.concatenate([
        place(raw["eb1"], 0, 0, 1, LANE),
        place(raw["eb2"][:, :features], 0, mu_off, 1, LANE),
        place(raw["eb2"][:, features:], 0, lv_off, 1, LANE),
        place(raw["db1"], 0, 0, 1, LANE),
        place(raw["db2"], 0, 0, 1, LANE),
        place(raw["db3"], 0, 0, 1, LANE),
    ], axis=0)                                                  # (6, 128)

    return dict(w_e1=w_e1, w_e2=w_e2, w_d1z=w_d1z, w_d1x=w_d1x,
                w_d2=w_d2, w_d3=w_d3, b_stack=b_stack)


def reference_forward(x, xp, eps, p):
    """Plain-JAX reference of the PyTorch forward, for validation."""
    h = jnp.maximum(x @ p["ew1"] + p["eb1"], 0.0)
    enc = h @ p["ew2"] + p["eb2"]
    f = p["ew2"].shape[1] // 2
    mu, log_var = enc[:, :f], enc[:, f:]
    z = mu + eps * jnp.exp(0.5 * log_var)
    d = jnp.concatenate([z, xp], axis=-1)
    d = jnp.maximum(d @ p["dw1"] + p["db1"], 0.0)
    d = jnp.maximum(d @ p["dw2"] + p["db2"], 0.0)
    recon = d @ p["dw3"] + p["db3"]
    return recon, mu, log_var


if __name__ == "__main__":
    # small, forward-consistent shapes
    batch = 8
    input_size = 16
    features = 8
    extra_decoder_input = 4
    reconstruct_size = 16

    key = jax.random.PRNGKey(0)
    k_params, k_x, k_xp, k_eps = jax.random.split(key, 4)

    raw = init_raw_params(k_params, input_size, features,
                          extra_decoder_input, reconstruct_size)
    params = pack_params(raw)

    x = jax.random.normal(k_x, (batch, input_size), jnp.float32)
    xp = jax.random.normal(k_xp, (batch, extra_decoder_input), jnp.float32)
    eps = jax.random.normal(k_eps, (batch, features), jnp.float32)

    recon, mu, log_var = linear_vae_forward(
        x, xp, eps, params,
        features=features, reconstruct_size=reconstruct_size)
    jax.block_until_ready((recon, mu, log_var))

    # sanity check against pure-JAX reference (uses the unpadded weights)
    r_ref, mu_ref, lv_ref = reference_forward(x, xp, eps, raw)
    assert jnp.allclose(recon, r_ref, atol=1e-4, rtol=1e-4)
    assert jnp.allclose(mu, mu_ref, atol=1e-4, rtol=1e-4)
    assert jnp.allclose(log_var, lv_ref, atol=1e-4, rtol=1e-4)

    print("KERNEL_OK")
</pallas_src>

<mosaic_0001>
module attributes {stable_mosaic.version = 11 : i64} {
  func.func @_vae_kernel(%arg0: i32, %arg1: memref<8x28xf32, #tpu.memory_space<vmem>>, %arg2: memref<28x128xf32, #tpu.memory_space<vmem>>, %arg3: memref<128x256xf32, #tpu.memory_space<vmem>>, %arg4: memref<8x128xf32, #tpu.memory_space<vmem>>, %arg5: memref<28x128xf32, #tpu.memory_space<vmem>>, %arg6: memref<128x128xf32, #tpu.memory_space<vmem>>, %arg7: memref<128x128xf32, #tpu.memory_space<vmem>>, %arg8: memref<6x128xf32, #tpu.memory_space<vmem>>, %arg9: memref<8x128xf32, #tpu.memory_space<vmem>>) attributes {dimension_semantics = [#tpu.dimension_semantics<parallel>], iteration_bounds = array<i64: 1>, scalar_prefetch = 0 : i64, scratch_operands = 0 : i64, tpu.core_type = #tpu.core_type<tc>, window_params = [{transform_indices = @transform_0, window_bounds = array<i64: 8, 28>}, {pipeline_mode = #tpu.pipeline_mode<synchronous>, transform_indices = @transform_1, window_bounds = array<i64: 28, 128>}, {pipeline_mode = #tpu.pipeline_mode<synchronous>, transform_indices = @transform_2, window_bounds = array<i64: 128, 256>}, {pipeline_mode = #tpu.pipeline_mode<synchronous>, transform_indices = @transform_3, window_bounds = array<i64: 8, 128>}, {pipeline_mode = #tpu.pipeline_mode<synchronous>, transform_indices = @transform_4, window_bounds = array<i64: 28, 128>}, {pipeline_mode = #tpu.pipeline_mode<synchronous>, transform_indices = @transform_5, window_bounds = array<i64: 128, 128>}, {pipeline_mode = #tpu.pipeline_mode<synchronous>, transform_indices = @transform_6, window_bounds = array<i64: 128, 128>}, {pipeline_mode = #tpu.pipeline_mode<synchronous>, transform_indices = @transform_7, window_bounds = array<i64: 6, 128>}, {transform_indices = @transform_8, window_bounds = array<i64: 8, 128>}]} {
    %c0 = arith.constant 0 : index
    %c0_0 = arith.constant 0 : index
    %0 = vector.load %arg1[%c0, %c0_0] : memref<8x28xf32, #tpu.memory_space<vmem>>, vector<8x28xf32>
    %c0_1 = arith.constant 0 : index
    %c0_2 = arith.constant 0 : index
    %1 = vector.load %arg2[%c0_1, %c0_2] : memref<28x128xf32, #tpu.memory_space<vmem>>, vector<28x128xf32>
    %cst = arith.constant dense<0.000000e+00> : vector<8x128xf32>
    %2 = tpu.matmul %0, %1, %cst {dimension_numbers = #tpu.dot_dimension_numbers<[1], [0], [0], [1], [0, 0, 1, 1], [], []>} : vector<8x28xf32>, vector<28x128xf32>, vector<8x128xf32> -> vector<8x128xf32>
    %c0_3 = arith.constant 0 : index
    %c0_4 = arith.constant 0 : index
    %3 = vector.load %arg8[%c0_3, %c0_4] : memref<6x128xf32, #tpu.memory_space<vmem>>, vector<1x128xf32>
    %4 = vector.broadcast %3 : vector<1x128xf32> to vector<8x128xf32>
    %5 = arith.addf %2, %4 : vector<8x128xf32>
    %cst_5 = arith.constant 0.000000e+00 : f32
    %6 = vector.broadcast %cst_5 : f32 to vector<8x128xf32>
    %7 = arith.maximumf %5, %6 : vector<8x128xf32>
    %c0_6 = arith.constant 0 : index
    %c0_7 = arith.constant 0 : index
    %8 = vector.load %arg3[%c0_6, %c0_7] : memref<128x256xf32, #tpu.memory_space<vmem>>, vector<128x256xf32>
    %cst_8 = arith.constant dense<0.000000e+00> : vector<8x256xf32>
    %9 = tpu.matmul %7, %8, %cst_8 {dimension_numbers = #tpu.dot_dimension_numbers<[1], [0], [0], [1], [0, 0, 1, 1], [], []>} : vector<8x128xf32>, vector<128x256xf32>, vector<8x256xf32> -> vector<8x256xf32>
    %10 = vector.extract_strided_slice %9 {offsets = [0, 0], sizes = [8, 128], strides = [1, 1]} : vector<8x256xf32> to vector<8x128xf32>
    %c1 = arith.constant 1 : index
    %c0_9 = arith.constant 0 : index
    %11 = vector.load %arg8[%c1, %c0_9] : memref<6x128xf32, #tpu.memory_space<vmem>>, vector<1x128xf32>
    %12 = vector.broadcast %11 : vector<1x128xf32> to vector<8x128xf32>
    %13 = arith.addf %10, %12 : vector<8x128xf32>
    %14 = vector.extract_strided_slice %9 {offsets = [0, 128], sizes = [8, 128], strides = [1, 1]} : vector<8x256xf32> to vector<8x128xf32>
    %c2 = arith.constant 2 : index
    %c0_10 = arith.constant 0 : index
    %15 = vector.load %arg8[%c2, %c0_10] : memref<6x128xf32, #tpu.memory_space<vmem>>, vector<1x128xf32>
    %16 = vector.broadcast %15 : vector<1x128xf32> to vector<8x128xf32>
    %17 = arith.addf %14, %16 : vector<8x128xf32>
    %18 = vector.extract_strided_slice %0 {offsets = [0, 0], sizes = [8, 8], strides = [1, 1]} : vector<8x28xf32> to vector<8x8xf32>
    %19 = vector.extract_strided_slice %17 {offsets = [0, 24], sizes = [8, 8], strides = [1, 1]} : vector<8x128xf32> to vector<8x8xf32>
    %cst_11 = arith.constant 5.000000e-01 : f32
    %20 = vector.broadcast %cst_11 : f32 to vector<8x8xf32>
    %21 = arith.mulf %20, %19 : vector<8x8xf32>
    %22 = math.exp %21 : vector<8x8xf32>
    %23 = vector.extract_strided_slice %13 {offsets = [0, 16], sizes = [8, 8], strides = [1, 1]} : vector<8x128xf32> to vector<8x8xf32>
    %24 = arith.mulf %18, %22 : vector<8x8xf32>
    %25 = arith.addf %23, %24 : vector<8x8xf32>
    %c0_12 = arith.constant 0 : index
    %c0_13 = arith.constant 0 : index
    %26 = vector.load %arg4[%c0_12, %c0_13] : memref<8x128xf32, #tpu.memory_space<vmem>>, vector<8x128xf32>
    %cst_14 = arith.constant dense<0.000000e+00> : vector<8x128xf32>
    %27 = tpu.matmul %25, %26, %cst_14 {dimension_numbers = #tpu.dot_dimension_numbers<[1], [0], [0], [1], [0, 0, 1, 1], [], []>} : vector<8x8xf32>, vector<8x128xf32>, vector<8x128xf32> -> vector<8x128xf32>
    %c0_15 = arith.constant 0 : index
    %c0_16 = arith.constant 0 : index
    %28 = vector.load %arg5[%c0_15, %c0_16] : memref<28x128xf32, #tpu.memory_space<vmem>>, vector<28x128xf32>
    %cst_17 = arith.constant dense<0.000000e+00> : vector<8x128xf32>
    %29 = tpu.matmul %0, %28, %cst_17 {dimension_numbers = #tpu.dot_dimension_numbers<[1], [0], [0], [1], [0, 0, 1, 1], [], []>} : vector<8x28xf32>, vector<28x128xf32>, vector<8x128xf32> -> vector<8x128xf32>
    %30 = arith.addf %27, %29 : vector<8x128xf32>
    %c3 = arith.constant 3 : index
    %c0_18 = arith.constant 0 : index
    %31 = vector.load %arg8[%c3, %c0_18] : memref<6x128xf32, #tpu.memory_space<vmem>>, vector<1x128xf32>
    %32 = vector.broadcast %31 : vector<1x128xf32> to vector<8x128xf32>
    %33 = arith.addf %30, %32 : vector<8x128xf32>
    %cst_19 = arith.constant 0.000000e+00 : f32
    %34 = vector.broadcast %cst_19 : f32 to vector<8x128xf32>
    %35 = arith.maximumf %33, %34 : vector<8x128xf32>
    %c0_20 = arith.constant 0 : index
    %c0_21 = arith.constant 0 : index
    %36 = vector.load %arg6[%c0_20, %c0_21] : memref<128x128xf32, #tpu.memory_space<vmem>>, vector<128x128xf32>
    %cst_22 = arith.constant dense<0.000000e+00> : vector<8x128xf32>
    %37 = tpu.matmul %35, %36, %cst_22 {dimension_numbers = #tpu.dot_dimension_numbers<[1], [0], [0], [1], [0, 0, 1, 1], [], []>} : vector<8x128xf32>, vector<128x128xf32>, vector<8x128xf32> -> vector<8x128xf32>
    %c4 = arith.constant 4 : index
    %c0_23 = arith.constant 0 : index
    %38 = vector.load %arg8[%c4, %c0_23] : memref<6x128xf32, #tpu.memory_space<vmem>>, vector<1x128xf32>
    %39 = vector.broadcast %38 : vector<1x128xf32> to vector<8x128xf32>
    %40 = arith.addf %37, %39 : vector<8x128xf32>
    %cst_24 = arith.constant 0.000000e+00 : f32
    %41 = vector.broadcast %cst_24 : f32 to vector<8x128xf32>
    %42 = arith.maximumf %40, %41 : vector<8x128xf32>
    %c0_25 = arith.constant 0 : index
    %c0_26 = arith.constant 0 : index
    %43 = vector.load %arg7[%c0_25, %c0_26] : memref<128x128xf32, #tpu.memory_space<vmem>>, vector<128x128xf32>
    %cst_27 = arith.constant dense<0.000000e+00> : vector<8x128xf32>
    %44 = tpu.matmul %42, %43, %cst_27 {dimension_numbers = #tpu.dot_dimension_numbers<[1], [0], [0], [1], [0, 0, 1, 1], [], []>} : vector<8x128xf32>, vector<128x128xf32>, vector<8x128xf32> -> vector<8x128xf32>
    %c5 = arith.constant 5 : index
    %c0_28 = arith.constant 0 : index
    %45 = vector.load %arg8[%c5, %c0_28] : memref<6x128xf32, #tpu.memory_space<vmem>>, vector<1x128xf32>
    %46 = vector.broadcast %45 : vector<1x128xf32> to vector<8x128xf32>
    %47 = arith.addf %44, %46 : vector<8x128xf32>
    %48 = arith.addf %47, %13 : vector<8x128xf32>
    %49 = arith.addf %48, %17 : vector<8x128xf32>
    %c0_29 = arith.constant 0 : index
    %c0_30 = arith.constant 0 : index
    %50 = vector.load %arg9[%c0_29, %c0_30] : memref<8x128xf32, #tpu.memory_space<vmem>>, vector<8x128xf32>
    tpu.vector_store %arg9[%c0_29, %c0_30], %49 {strides = array<i32>} : memref<8x128xf32, #tpu.memory_space<vmem>>, vector<8x128xf32>,
    return
  }
  func.func @transform_0(%arg0: i32) -> (i32, i32) {
    %c0_i32 = arith.constant 0 : i32
    %c0_i32_0 = arith.constant 0 : i32
    return %arg0, %c0_i32 : i32, i32
  }
  func.func @transform_1(%arg0: i32) -> (i32, i32) {
    %c0_i32 = arith.constant 0 : i32
    %c0_i32_0 = arith.constant 0 : i32
    %c0_i32_1 = arith.constant 0 : i32
    return %c0_i32, %c0_i32_0 : i32, i32
  }
  func.func @transform_2(%arg0: i32) -> (i32, i32) {
    %c0_i32 = arith.constant 0 : i32
    %c0_i32_0 = arith.constant 0 : i32
    %c0_i32_1 = arith.constant 0 : i32
    return %c0_i32, %c0_i32_0 : i32, i32
  }
  func.func @transform_3(%arg0: i32) -> (i32, i32) {
    %c0_i32 = arith.constant 0 : i32
    %c0_i32_0 = arith.constant 0 : i32
    %c0_i32_1 = arith.constant 0 : i32
    return %c0_i32, %c0_i32_0 : i32, i32
  }
  func.func @transform_4(%arg0: i32) -> (i32, i32) {
    %c0_i32 = arith.constant 0 : i32
    %c0_i32_0 = arith.constant 0 : i32
    %c0_i32_1 = arith.constant 0 : i32
    return %c0_i32, %c0_i32_0 : i32, i32
  }
  func.func @transform_5(%arg0: i32) -> (i32, i32) {
    %c0_i32 = arith.constant 0 : i32
    %c0_i32_0 = arith.constant 0 : i32
    %c0_i32_1 = arith.constant 0 : i32
    return %c0_i32, %c0_i32_0 : i32, i32
  }
  func.func @transform_6(%arg0: i32) -> (i32, i32) {
    %c0_i32 = arith.constant 0 : i32
    %c0_i32_0 = arith.constant 0 : i32
    %c0_i32_1 = arith.constant 0 : i32
    return %c0_i32, %c0_i32_0 : i32, i32
  }
  func.func @transform_7(%arg0: i32) -> (i32, i32) {
    %c0_i32 = arith.constant 0 : i32
    %c0_i32_0 = arith.constant 0 : i32
    %c0_i32_1 = arith.constant 0 : i32
    return %c0_i32, %c0_i32_0 : i32, i32
  }
  func.func @transform_8(%arg0: i32) -> (i32, i32) {
    %c0_i32 = arith.constant 0 : i32
    %c0_i32_0 = arith.constant 0 : i32
    return %arg0, %c0_i32 : i32, i32
  }
}

</mosaic_0001>

<llo_original>
// kernel: linear_vae_forward.1
$region0: #{linear_vae_forward.1}
  #allocation0 [shape = 'u32[]', space=smem, size = 0x4, offset = 0x4, fixed_abs, tag = 'smem constant byte address 0x4 - core index']
  #allocation1 [shape = 'u32[144,128]{1,0:T(1,128)}', space=vmem, size = 0x12000, scoped, tag = 'internal scratch']
  %s0 = inlined_call_operand.vmem [shape: f32[8,28], index: 0, kind: input, shape index: {}]
  %s1 = inlined_call_operand.vmem [shape: f32[28,128], index: 1, kind: input, shape index: {}]
  %s2 = inlined_call_operand.hbm [shape: f32[128,256], index: 2, kind: input, shape index: {}]
  %s3 = inlined_call_operand.vmem [shape: f32[8,128], index: 3, kind: input, shape index: {}]
  %s4 = inlined_call_operand.hbm [shape: f32[28,128], index: 4, kind: input, shape index: {}]
  %s5 = inlined_call_operand.hbm [shape: f32[128,128], index: 5, kind: input, shape index: {}]
  %s6 = inlined_call_operand.hbm [shape: f32[128,128], index: 6, kind: input, shape index: {}]
  %s7 = inlined_call_operand.vmem [shape: f32[6,128], index: 7, kind: input, shape index: {}]
  %s8 = inlined_call_operand.vmem [shape: f32[8,128], index: 8, kind: output, shape index: {}]
  %s9 = sld [smem:[#allocation0]]
  $region58: #{linear_vae_forward.1} parent=0
    _
  %s11 = ssub.s32 1, %s9
  %s12 = scalar_select 0, %s11, %s9
  $region1: #{linear_vae_forward.1} parent=0
    #allocation2 [shape = 'u8[131072]{0}', space=vmem, size = 0x20000, scoped, tag = 'input window, operand 2, single buffered']
    #allocation3 [shape = 's32[1]{0}', space=sflag, size = 0x4, scoped, tag = 'scoped memory for linear_vae_forward.1']
    #allocation4 [shape = 'u8[16384]{0}', space=vmem, size = 0x4000, scoped, tag = 'input window, operand 4, single buffered']
    #allocation5 [shape = 's32[1]{0}', space=sflag, size = 0x4, scoped, tag = 'scoped memory for linear_vae_forward.1']
    #allocation6 [shape = 'u8[65536]{0}', space=vmem, size = 0x10000, scoped, tag = 'input window, operand 5, single buffered']
    #allocation7 [shape = 'u8[65536]{0}', space=vmem, size = 0x10000, scoped, tag = 'input window, operand 6, single buffered']
    #allocation8 [shape = 's32[1]{0}', space=sflag, size = 0x4, scoped, tag = 'scoped memory for linear_vae_forward.1']
    %13 = vsyncpa [#allocation3], 0
    %14 = vsyncpa [#allocation5], 0
    %15 = vsyncpa [#allocation8], 0
    // Predicated region
    $region2: #{linear_vae_forward.1} parent=1 // pred_check
      _
    $region3: #{linear_vae_forward.1} parent=1 // pred_check_branch
      %17 = sbr.rel (0) target = $region5
    $region4: #{linear_vae_forward.1} parent=1 // pred_region
      _
    $region5: #{linear_vae_forward.1} parent=1 // pred_fallthru
      _
    // Predicated region
    $region6: #{linear_vae_forward.1} parent=1 // pred_check
      _
    $region7: #{linear_vae_forward.1} parent=1 // pred_check_branch
      %19 = sbr.rel (0) target = $region9
    $region8: #{linear_vae_forward.1} parent=1 // pred_region
      _
    $region9: #{linear_vae_forward.1} parent=1 // pred_fallthru
      _
    // Predicated region
    $region10: #{linear_vae_forward.1} parent=1 // pred_check
      _
    $region11: #{linear_vae_forward.1} parent=1 // pred_check_branch
      %21 = sbr.rel (0) target = $region13
    $region12: #{linear_vae_forward.1} parent=1 // pred_region
      %s23 = ssub.s32 4096, 4096
      %24 = vsyncadd [#allocation3], %s23
      %s25 = sshll.u32 [#allocation2], 4
      %s26 = int_to_ptr.vmem [resolvable:$true] %s25
      %31 = dma.hbm_to_vmem [thread:$0]  %s2, 4096, %s26, [#allocation3], 256, 256, 16
    $region13: #{linear_vae_forward.1} parent=1 // pred_fallthru
      _
    // Predicated region
    $region14: #{linear_vae_forward.1} parent=1 // pred_check
      _
    $region15: #{linear_vae_forward.1} parent=1 // pred_check_branch
      %33 = sbr.rel (0) target = $region17
    $region16: #{linear_vae_forward.1} parent=1 // pred_region
      _
    $region17: #{linear_vae_forward.1} parent=1 // pred_fallthru
      _
    // Predicated region
    $region18: #{linear_vae_forward.1} parent=1 // pred_check
      _
    $region19: #{linear_vae_forward.1} parent=1 // pred_check_branch
      %35 = sbr.rel (0) target = $region21
    $region20: #{linear_vae_forward.1} parent=1 // pred_region
      %s37 = ssub.s32 512, 512
      %38 = vsyncadd [#allocation5], %s37
      %s39 = sshll.u32 [#allocation4], 4
      %s40 = int_to_ptr.vmem [resolvable:$true] %s39
      %45 = dma.hbm_to_vmem [thread:$0]  %s4, 512, %s40, [#allocation5], 128, 128, 8
    $region21: #{linear_vae_forward.1} parent=1 // pred_fallthru
      _
    // Predicated region
    $region22: #{linear_vae_forward.1} parent=1 // pred_check
      _
    $region23: #{linear_vae_forward.1} parent=1 // pred_check_branch
      %47 = sbr.rel (0) target = $region25
    $region24: #{linear_vae_forward.1} parent=1 // pred_region
      %s49 = ssub.s32 2048, 2048
      %50 = vsyncadd [#allocation5], %s49
      %s51 = sshll.u32 [#allocation6], 4
      %s52 = int_to_ptr.vmem [resolvable:$true] %s51
      %57 = dma.hbm_to_vmem [thread:$0]  %s5, 2048, %s52, [#allocation5], 128, 128, 8
    $region25: #{linear_vae_forward.1} parent=1 // pred_fallthru
      _
    // Predicated region
    $region26: #{linear_vae_forward.1} parent=1 // pred_check
      _
    $region27: #{linear_vae_forward.1} parent=1 // pred_check_branch
      %59 = sbr.rel (0) target = $region29
    $region28: #{linear_vae_forward.1} parent=1 // pred_region
      %s61 = ssub.s32 2048, 2048
      %62 = vsyncadd [#allocation8], %s61
      %s63 = sshll.u32 [#allocation7], 4
      %s64 = int_to_ptr.vmem [resolvable:$true] %s63
      %69 = dma.hbm_to_vmem [thread:$0]  %s6, 2048, %s64, [#allocation8], 128, 128, 8
    $region29: #{linear_vae_forward.1} parent=1 // pred_fallthru
      _
    // Predicated region
    $region30: #{linear_vae_forward.1} parent=1 // pred_check
      _
    $region31: #{linear_vae_forward.1} parent=1 // pred_check_branch
      %71 = sbr.rel (0) target = $region33
    $region32: #{linear_vae_forward.1} parent=1 // pred_region
      _
    $region33: #{linear_vae_forward.1} parent=1 // pred_fallthru
      _
    // Predicated region
    $region34: #{linear_vae_forward.1} parent=1 // pred_check
      _
    $region35: #{linear_vae_forward.1} parent=1 // pred_check_branch
      %73 = sbr.rel (0) target = $region37
    $region36: #{linear_vae_forward.1} parent=1 // pred_region
      %74 = dma.done [#allocation3], 4096
    $region37: #{linear_vae_forward.1} parent=1 // pred_fallthru
      _
    // Predicated region
    $region38: #{linear_vae_forward.1} parent=1 // pred_check
      _
    $region39: #{linear_vae_forward.1} parent=1 // pred_check_branch
      %76 = sbr.rel (0) target = $region41
    $region40: #{linear_vae_forward.1} parent=1 // pred_region
      %77 = dma.done [#allocation5], 512
    $region41: #{linear_vae_forward.1} parent=1 // pred_fallthru
      _
    // Predicated region
    $region42: #{linear_vae_forward.1} parent=1 // pred_check
      _
    $region43: #{linear_vae_forward.1} parent=1 // pred_check_branch
      %79 = sbr.rel (0) target = $region45
    $region44: #{linear_vae_forward.1} parent=1 // pred_region
      %80 = dma.done [#allocation5], 2048
    $region45: #{linear_vae_forward.1} parent=1 // pred_fallthru
      _
    // Predicated region
    $region46: #{linear_vae_forward.1} parent=1 // pred_check
      _
    $region47: #{linear_vae_forward.1} parent=1 // pred_check_branch
      %82 = sbr.rel (0) target = $region49
    $region48: #{linear_vae_forward.1} parent=1 // pred_region
      %83 = dma.done [#allocation8], 2048
    $region49: #{linear_vae_forward.1} parent=1 // pred_fallthru
      _
    %v84 = vld [vmem:[%s0] sm:$0xff]
    %v85 = vld [vmem:[%s1] sm:$0xff]
    %v86 = vld [vmem:[%s1 + $0x8] sm:$0xff]
    %v87 = vld [vmem:[%s1 + $0x10] sm:$0xff]
    %v88 = vld [vmem:[%s1 + $0x18] sm:$0xf]
    %v89 = vld [vmem:[%s7] sm:$0x1]
    %v90 = vlaneseq
    %v91 = vshrl.u32 %v90, 7
    %v92 = vsub.s32 0, %v91
    %v93 = vrot.slane %v89, %v92
    %vm94 = vcmask 228352
    %v96 = vsel %vm94, %v84, 0
    %vm98 = vcmask 1043456
    %v100 = vsel %vm98, %v88, 0
    %102 = vmatprep.subr.mxu0 0.0
    %103 = vmatpush1.msra.mxu0 0.0
    %104 = vmatprep.subr.mxu0 0.0
    %105 = vmatpush1.msra.mxu0 0.0
    %106 = vmatprep.subr.mxu0 0.0
    %107 = vmatpush1.msra.mxu0 0.0
    %108 = vmatprep.subr.mxu0 0.0
    %109 = vmatpush1.msra.mxu0 0.0
    %110 = vmatprep.subr.mxu0 0.0
    %111 = vmatpush1.msra.mxu0 0.0
    %112 = vmatprep.subr.mxu0 0.0
    %113 = vmatpush1.msra.mxu0 0.0
    %114 = vmatprep.subr.mxu0 0.0
    %115 = vmatpush1.msra.mxu0 0.0
    %116 = vmatprep.subr.mxu0 0.0
    %117 = vmatpush1.msra.mxu0 0.0
    %118 = vmatprep.subr.mxu0 0.0
    %119 = vmatpush1.msra.mxu0 0.0
    %120 = vmatprep.subr.mxu0 0.0
    %121 = vmatpush1.msra.mxu0 0.0
    %122 = vmatprep.subr.mxu0 0.0
    %123 = vmatpush1.msra.mxu0 0.0
    %124 = vmatprep.subr.mxu0 0.0
    %125 = vmatpush1.msra.mxu0 0.0
    %126 = vmatprep.subr.mxu0 0.0
    %127 = vmatpush1.msra.mxu0 %v100
    %128 = vmatprep.subr.mxu0 0.0
    %129 = vmatpush1.msra.mxu0 %v87
    %130 = vmatprep.subr.mxu0 0.0
    %131 = vmatpush1.msra.mxu0 %v86
    %132 = vmatprep.subr.mxu0 0.0
    %133 = vmatpush1.msra.mxu0 %v85
    %134 = vmatprep.subr.mxu0 0.0
    %135 = vmatpush2.msra.mxu0 0.0
    %136 = vmatprep.subr.mxu0 0.0
    %137 = vmatpush2.msra.mxu0 0.0
    %138 = vmatprep.subr.mxu0 0.0
    %139 = vmatpush2.msra.mxu0 0.0
    %140 = vmatprep.subr.mxu0 0.0
    %141 = vmatpush2.msra.mxu0 0.0
    %142 = vmatprep.subr.mxu0 0.0
    %143 = vmatpush2.msra.mxu0 0.0
    %144 = vmatprep.subr.mxu0 0.0
    %145 = vmatpush2.msra.mxu0 0.0
    %146 = vmatprep.subr.mxu0 0.0
    %147 = vmatpush2.msra.mxu0 0.0
    %148 = vmatprep.subr.mxu0 0.0
    %149 = vmatpush2.msra.mxu0 0.0
    %150 = vmatprep.subr.mxu0 0.0
    %151 = vmatpush2.msra.mxu0 0.0
    %152 = vmatprep.subr.mxu0 0.0
    %153 = vmatpush2.msra.mxu0 0.0
    %154 = vmatprep.subr.mxu0 0.0
    %155 = vmatpush2.msra.mxu0 0.0
    %156 = vmatprep.subr.mxu0 0.0
    %157 = vmatpush2.msra.mxu0 0.0
    %158 = vmatprep.subr.mxu0 0.0
    %159 = vmatpush2.msra.mxu0 0.0
    %160 = vmatprep.subr.mxu0 0.0
    %161 = vmatpush2.msra.mxu0 0.0
    %162 = vmatprep.subr.mxu0 0.0
    %163 = vmatpush2.msra.mxu0 0.0
    %164 = vmatprep.subr.mxu0 0.0
    %165 = vmatpush2.msra.mxu0 0.0
    %166 = vmatprep.mubr.f32.mxu0 0.0
    %167 = vmatmul.mubr.f32.gmra.mxu0 %v96
    %v168 = vpop.f32.mrf.mxu0
    %v169 = vadd.f32 %v93, %v168
    %v170 = vpop.f32.mrf.mxu0
    %171 = vdwg.mxu0
    %v172 = vmax.f32 %v169, 0.0
    %v173 = vld [vmem:[#allocation2] sm:$0xff]
    %v174 = vld [vmem:[#allocation2 + $0x8] sm:$0xff]
    %v175 = vld [vmem:[#allocation2 + $0x10] sm:$0xff]
    %v176 = vld [vmem:[#allocation2 + $0x18] sm:$0xff]
    %v177 = vld [vmem:[#allocation2 + $0x20] sm:$0xff]
    %v178 = vld [vmem:[#allocation2 + $0x28] sm:$0xff]
    %v179 = vld [vmem:[#allocation2 + $0x30] sm:$0xff]
    %v180 = vld [vmem:[#allocation2 + $0x38] sm:$0xff]
    %v181 = vld [vmem:[#allocation2 + $0x40] sm:$0xff]
    %v182 = vld [vmem:[#allocation2 + $0x48] sm:$0xff]
    %v183 = vld [vmem:[#allocation2 + $0x50] sm:$0xff]
    %v184 = vld [vmem:[#allocation2 + $0x58] sm:$0xff]
    %v185 = vld [vmem:[#allocation2 + $0x60] sm:$0xff]
    %v186 = vld [vmem:[#allocation2 + $0x68] sm:$0xff]
    %v187 = vld [vmem:[#allocation2 + $0x70] sm:$0xff]
    %v188 = vld [vmem:[#allocation2 + $0x78] sm:$0xff]
    %v189 = vld [vmem:[#allocation2 + $0x80] sm:$0xff]
    %v190 = vld [vmem:[#allocation2 + $0x88] sm:$0xff]
    %v191 = vld [vmem:[#allocation2 + $0x90] sm:$0xff]
    %v192 = vld [vmem:[#allocation2 + $0x98] sm:$0xff]
    %v193 = vld [vmem:[#allocation2 + $0xa0] sm:$0xff]
    %v194 = vld [vmem:[#allocation2 + $0xa8] sm:$0xff]
    %v195 = vld [vmem:[#allocation2 + $0xb0] sm:$0xff]
    %v196 = vld [vmem:[#allocation2 + $0xb8] sm:$0xff]
    %v197 = vld [vmem:[#allocation2 + $0xc0] sm:$0xff]
    %v198 = vld [vmem:[#allocation2 + $0xc8] sm:$0xff]
    %v199 = vld [vmem:[#allocation2 + $0xd0] sm:$0xff]
    %v200 = vld [vmem:[#allocation2 + $0xd8] sm:$0xff]
    %v201 = vld [vmem:[#allocation2 + $0xe0] sm:$0xff]
    %v202 = vld [vmem:[#allocation2 + $0xe8] sm:$0xff]
    %v203 = vld [vmem:[#allocation2 + $0xf0] sm:$0xff]
    %v204 = vld [vmem:[#allocation2 + $0xf8] sm:$0xff]
    %205 = vmatprep.subr.mxu0 %v204
    %206 = vmatpush1.msra.mxu0 %v203
    %207 = vmatprep.subr.mxu0 %v202
    %208 = vmatpush1.msra.mxu0 %v201
    %209 = vmatprep.subr.mxu0 %v200
    %210 = vmatpush1.msra.mxu0 %v199
    %211 = vmatprep.subr.mxu0 %v198
    %212 = vmatpush1.msra.mxu0 %v197
    %213 = vmatprep.subr.mxu0 %v196
    %214 = vmatpush1.msra.mxu0 %v195
    %215 = vmatprep.subr.mxu0 %v194
    %216 = vmatpush1.msra.mxu0 %v193
    %217 = vmatprep.subr.mxu0 %v192
    %218 = vmatpush1.msra.mxu0 %v191
    %219 = vmatprep.subr.mxu0 %v190
    %220 = vmatpush1.msra.mxu0 %v189
    %221 = vmatprep.subr.mxu0 %v188
    %222 = vmatpush1.msra.mxu0 %v187
    %223 = vmatprep.subr.mxu0 %v186
    %224 = vmatpush1.msra.mxu0 %v185
    %225 = vmatprep.subr.mxu0 %v184
    %226 = vmatpush1.msra.mxu0 %v183
    %227 = vmatprep.subr.mxu0 %v182
    %228 = vmatpush1.msra.mxu0 %v181
    %229 = vmatprep.subr.mxu0 %v180
    %230 = vmatpush1.msra.mxu0 %v179
    %231 = vmatprep.subr.mxu0 %v178
    %232 = vmatpush1.msra.mxu0 %v177
    %233 = vmatprep.subr.mxu0 %v176
    %234 = vmatpush1.msra.mxu0 %v175
    %235 = vmatprep.subr.mxu0 %v174
    %236 = vmatpush1.msra.mxu0 %v173
    %237 = vmatprep.subr.mxu0 0.0
    %238 = vmatpush2.msra.mxu0 0.0
    %239 = vmatprep.subr.mxu0 0.0
    %240 = vmatpush2.msra.mxu0 0.0
    %241 = vmatprep.subr.mxu0 0.0
    %242 = vmatpush2.msra.mxu0 0.0
    %243 = vmatprep.subr.mxu0 0.0
    %244 = vmatpush2.msra.mxu0 0.0
    %245 = vmatprep.subr.mxu0 0.0
    %246 = vmatpush2.msra.mxu0 0.0
    %247 = vmatprep.subr.mxu0 0.0
    %248 = vmatpush2.msra.mxu0 0.0
    %249 = vmatprep.subr.mxu0 0.0
    %250 = vmatpush2.msra.mxu0 0.0
    %251 = vmatprep.subr.mxu0 0.0
    %252 = vmatpush2.msra.mxu0 0.0
    %253 = vmatprep.subr.mxu0 0.0
    %254 = vmatpush2.msra.mxu0 0.0
    %255 = vmatprep.subr.mxu0 0.0
    %256 = vmatpush2.msra.mxu0 0.0
    %257 = vmatprep.subr.mxu0 0.0
    %258 = vmatpush2.msra.mxu0 0.0
    %259 = vmatprep.subr.mxu0 0.0
    %260 = vmatpush2.msra.mxu0 0.0
    %261 = vmatprep.subr.mxu0 0.0
    %262 = vmatpush2.msra.mxu0 0.0
    %263 = vmatprep.subr.mxu0 0.0
    %264 = vmatpush2.msra.mxu0 0.0
    %265 = vmatprep.subr.mxu0 0.0
    %266 = vmatpush2.msra.mxu0 0.0
    %267 = vmatprep.subr.mxu0 0.0
    %268 = vmatpush2.msra.mxu0 0.0
    %269 = vmatprep.mubr.f32.mxu0 0.0
    %270 = vmatmul.mubr.f32.gmra.mxu0 %v172
    %v271 = vpop.f32.mrf.mxu0
    %v272 = vadd.f32 0.0, %v271
    %v273 = vpop.f32.mrf.mxu0
    %v274 = vadd.f32 0.0, %v273
    %275 = vdwg.mxu0
    %v276 = vld [vmem:[%s7 + $0x1] sm:$0x1]
    %v277 = vlaneseq
    %v278 = vshrl.u32 %v277, 7
    %v279 = vsub.s32 0, %v278
    %v280 = vrot.slane %v276, %v279
    %v281 = vadd.f32 %v272, %v280
    %v282 = vld [vmem:[%s7 + $0x2] sm:$0x1]
    %v283 = vlaneseq
    %v284 = vshrl.u32 %v283, 7
    %v285 = vsub.s32 0, %v284
    %v286 = vrot.slane %v282, %v285
    %v287 = vadd.f32 %v274, %v286
    %v288 = vmul.f32 %v287, 0.5
    %v289 = vmul.f32 %v288, 1.442695
    %v290 = vpow.pop %v289
    %292 = vrot.lane.b32.xlu0 %v290, 104
    %v293 = vpop.permute.xlu0 %292
    %v295 = vmul.f32 %v84, %v293
    %297 = vrot.lane.b32.xlu0 %v295, 16
    %v298 = vpop.permute.xlu0 %297
    %v300 = vadd.f32 %v281, %v298
    %v301 = vld [vmem:[%s3] sm:$0xff]
    %v302 = vld [vmem:[#allocation4] sm:$0xff]
    %v303 = vld [vmem:[#allocation4 + $0x8] sm:$0xff]
    %v304 = vld [vmem:[#allocation4 + $0x10] sm:$0xff]
    %v305 = vld [vmem:[#allocation4 + $0x18] sm:$0xf]
    %v307 = vsel %vm98, %v305, 0
    %309 = vmatprep.subr.mxu0 0.0
    %310 = vmatpush1.msra.mxu0 0.0
    %311 = vmatprep.subr.mxu0 0.0
    %312 = vmatpush1.msra.mxu0 0.0
    %313 = vmatprep.subr.mxu0 0.0
    %314 = vmatpush1.msra.mxu0 0.0
    %315 = vmatprep.subr.mxu0 0.0
    %316 = vmatpush1.msra.mxu0 0.0
    %317 = vmatprep.subr.mxu0 0.0
    %318 = vmatpush1.msra.mxu0 0.0
    %319 = vmatprep.subr.mxu0 0.0
    %320 = vmatpush1.msra.mxu0 0.0
    %321 = vmatprep.subr.mxu0 0.0
    %322 = vmatpush1.msra.mxu0 0.0
    %323 = vmatprep.subr.mxu0 0.0
    %324 = vmatpush1.msra.mxu0 0.0
    %325 = vmatprep.subr.mxu0 0.0
    %326 = vmatpush1.msra.mxu0 0.0
    %327 = vmatprep.subr.mxu0 0.0
    %328 = vmatpush1.msra.mxu0 0.0
    %329 = vmatprep.subr.mxu0 0.0
    %330 = vmatpush1.msra.mxu0 0.0
    %331 = vmatprep.subr.mxu0 0.0
    %332 = vmatpush1.msra.mxu0 0.0
    %333 = vmatprep.subr.mxu0 0.0
    %334 = vmatpush1.msra.mxu0 %v307
    %335 = vmatprep.subr.mxu0 0.0
    %336 = vmatpush1.msra.mxu0 %v304
    %337 = vmatprep.subr.mxu0 0.0
    %338 = vmatpush1.msra.mxu0 %v303
    %339 = vmatprep.subr.mxu0 0.0
    %340 = vmatpush1.msra.mxu0 %v302
    %341 = vmatprep.subr.mxu0 0.0
    %342 = vmatpush2.msra.mxu0 0.0
    %343 = vmatprep.subr.mxu0 0.0
    %344 = vmatpush2.msra.mxu0 0.0
    %345 = vmatprep.subr.mxu0 0.0
    %346 = vmatpush2.msra.mxu0 0.0
    %347 = vmatprep.subr.mxu0 0.0
    %348 = vmatpush2.msra.mxu0 0.0
    %349 = vmatprep.subr.mxu0 0.0
    %350 = vmatpush2.msra.mxu0 0.0
    %351 = vmatprep.subr.mxu0 0.0
    %352 = vmatpush2.msra.mxu0 0.0
    %353 = vmatprep.subr.mxu0 0.0
    %354 = vmatpush2.msra.mxu0 0.0
    %355 = vmatprep.subr.mxu0 0.0
    %356 = vmatpush2.msra.mxu0 0.0
    %357 = vmatprep.subr.mxu0 0.0
    %358 = vmatpush2.msra.mxu0 0.0
    %359 = vmatprep.subr.mxu0 0.0
    %360 = vmatpush2.msra.mxu0 0.0
    %361 = vmatprep.subr.mxu0 0.0
    %362 = vmatpush2.msra.mxu0 0.0
    %363 = vmatprep.subr.mxu0 0.0
    %364 = vmatpush2.msra.mxu0 0.0
    %365 = vmatprep.subr.mxu0 0.0
    %366 = vmatpush2.msra.mxu0 0.0
    %367 = vmatprep.subr.mxu0 0.0
    %368 = vmatpush2.msra.mxu0 0.0
    %369 = vmatprep.subr.mxu0 0.0
    %370 = vmatpush2.msra.mxu0 0.0
    %371 = vmatprep.subr.mxu0 0.0
    %372 = vmatpush2.msra.mxu0 0.0
    %373 = vmatprep.mubr.f32.mxu0 0.0
    %374 = vmatmul.mubr.f32.gmra.mxu0 %v96
    %v375 = vpop.f32.mrf.mxu0
    %v376 = vadd.f32 0.0, %v375
    %v377 = vpop.f32.mrf.mxu0
    %378 = vdwg.mxu0
    %380 = vrot.lane.b32.xlu0 %v300, 112
    %v381 = vpop.permute.xlu0 %380
    %vm382 = vcmask 64512
    %v383 = vsel %vm382, %v381, 0
    %385 = vmatprep.subr.mxu0 0.0
    %386 = vmatpush1.msra.mxu0 0.0
    %387 = vmatprep.subr.mxu0 0.0
    %388 = vmatpush1.msra.mxu0 0.0
    %389 = vmatprep.subr.mxu0 0.0
    %390 = vmatpush1.msra.mxu0 0.0
    %391 = vmatprep.subr.mxu0 0.0
    %392 = vmatpush1.msra.mxu0 0.0
    %393 = vmatprep.subr.mxu0 0.0
    %394 = vmatpush1.msra.mxu0 0.0
    %395 = vmatprep.subr.mxu0 0.0
    %396 = vmatpush1.msra.mxu0 0.0
    %397 = vmatprep.subr.mxu0 0.0
    %398 = vmatpush1.msra.mxu0 0.0
    %399 = vmatprep.subr.mxu0 0.0
    %400 = vmatpush1.msra.mxu0 0.0
    %401 = vmatprep.subr.mxu0 0.0
    %402 = vmatpush1.msra.mxu0 0.0
    %403 = vmatprep.subr.mxu0 0.0
    %404 = vmatpush1.msra.mxu0 0.0
    %405 = vmatprep.subr.mxu0 0.0
    %406 = vmatpush1.msra.mxu0 0.0
    %407 = vmatprep.subr.mxu0 0.0
    %408 = vmatpush1.msra.mxu0 0.0
    %409 = vmatprep.subr.mxu0 0.0
    %410 = vmatpush1.msra.mxu0 0.0
    %411 = vmatprep.subr.mxu0 0.0
    %412 = vmatpush1.msra.mxu0 0.0
    %413 = vmatprep.subr.mxu0 0.0
    %414 = vmatpush1.msra.mxu0 0.0
    %415 = vmatprep.subr.mxu0 0.0
    %416 = vmatpush1.msra.mxu0 %v301
    %417 = vmatprep.subr.mxu0 0.0
    %418 = vmatpush2.msra.mxu0 0.0
    %419 = vmatprep.subr.mxu0 0.0
    %420 = vmatpush2.msra.mxu0 0.0
    %421 = vmatprep.subr.mxu0 0.0
    %422 = vmatpush2.msra.mxu0 0.0
    %423 = vmatprep.subr.mxu0 0.0
    %424 = vmatpush2.msra.mxu0 0.0
    %425 = vmatprep.subr.mxu0 0.0
    %426 = vmatpush2.msra.mxu0 0.0
    %427 = vmatprep.subr.mxu0 0.0
    %428 = vmatpush2.msra.mxu0 0.0
    %429 = vmatprep.subr.mxu0 0.0
    %430 = vmatpush2.msra.mxu0 0.0
    %431 = vmatprep.subr.mxu0 0.0
    %432 = vmatpush2.msra.mxu0 0.0
    %433 = vmatprep.subr.mxu0 0.0
    %434 = vmatpush2.msra.mxu0 0.0
    %435 = vmatprep.subr.mxu0 0.0
    %436 = vmatpush2.msra.mxu0 0.0
    %437 = vmatprep.subr.mxu0 0.0
    %438 = vmatpush2.msra.mxu0 0.0
    %439 = vmatprep.subr.mxu0 0.0
    %440 = vmatpush2.msra.mxu0 0.0
    %441 = vmatprep.subr.mxu0 0.0
    %442 = vmatpush2.msra.mxu0 0.0
    %443 = vmatprep.subr.mxu0 0.0
    %444 = vmatpush2.msra.mxu0 0.0
    %445 = vmatprep.subr.mxu0 0.0
    %446 = vmatpush2.msra.mxu0 0.0
    %447 = vmatprep.subr.mxu0 0.0
    %448 = vmatpush2.msra.mxu0 0.0
    %449 = vmatprep.mubr.f32.mxu0 0.0
    %450 = vmatmul.mubr.f32.gmra.mxu0 %v383
    %v451 = vpop.f32.mrf.mxu0
    %v452 = vadd.f32 %v376, %v451
    %v453 = vpop.f32.mrf.mxu0
    %454 = vdwg.mxu0
    %v455 = vld [vmem:[%s7 + $0x3] sm:$0x1]
    %v456 = vlaneseq
    %v457 = vshrl.u32 %v456, 7
    %v458 = vsub.s32 0, %v457
    %v459 = vrot.slane %v455, %v458
    %v460 = vadd.f32 %v452, %v459
    %v461 = vmax.f32 %v460, 0.0
    %v462 = vld [vmem:[#allocation6] sm:$0xff]
    %v463 = vld [vmem:[#allocation6 + $0x8] sm:$0xff]
    %v464 = vld [vmem:[#allocation6 + $0x10] sm:$0xff]
    %v465 = vld [vmem:[#allocation6 + $0x18] sm:$0xff]
    %v466 = vld [vmem:[#allocation6 + $0x20] sm:$0xff]
    %v467 = vld [vmem:[#allocation6 + $0x28] sm:$0xff]
    %v468 = vld [vmem:[#allocation6 + $0x30] sm:$0xff]
    %v469 = vld [vmem:[#allocation6 + $0x38] sm:$0xff]
    %v470 = vld [vmem:[#allocation6 + $0x40] sm:$0xff]
    %v471 = vld [vmem:[#allocation6 + $0x48] sm:$0xff]
    %v472 = vld [vmem:[#allocation6 + $0x50] sm:$0xff]
    %v473 = vld [vmem:[#allocation6 + $0x58] sm:$0xff]
    %v474 = vld [vmem:[#allocation6 + $0x60] sm:$0xff]
    %v475 = vld [vmem:[#allocation6 + $0x68] sm:$0xff]
    %v476 = vld [vmem:[#allocation6 + $0x70] sm:$0xff]
    %v477 = vld [vmem:[#allocation6 + $0x78] sm:$0xff]
    %v478 = vld [vmem:[%s7 + $0x4] sm:$0x1]
    %v479 = vlaneseq
    %v480 = vshrl.u32 %v479, 7
    %v481 = vsub.s32 0, %v480
    %v482 = vrot.slane %v478, %v481
    %483 = vmatprep.subr.mxu0 0.0
    %484 = vmatpush1.msra.mxu0 %v477
    %485 = vmatprep.subr.mxu0 0.0
    %486 = vmatpush1.msra.mxu0 %v476
    %487 = vmatprep.subr.mxu0 0.0
    %488 = vmatpush1.msra.mxu0 %v475
    %489 = vmatprep.subr.mxu0 0.0
    %490 = vmatpush1.msra.mxu0 %v474
    %491 = vmatprep.subr.mxu0 0.0
    %492 = vmatpush1.msra.mxu0 %v473
    %493 = vmatprep.subr.mxu0 0.0
    %494 = vmatpush1.msra.mxu0 %v472
    %495 = vmatprep.subr.mxu0 0.0
    %496 = vmatpush1.msra.mxu0 %v471
    %497 = vmatprep.subr.mxu0 0.0
    %498 = vmatpush1.msra.mxu0 %v470
    %499 = vmatprep.subr.mxu0 0.0
    %500 = vmatpush1.msra.mxu0 %v469
    %501 = vmatprep.subr.mxu0 0.0
    %502 = vmatpush1.msra.mxu0 %v468
    %503 = vmatprep.subr.mxu0 0.0
    %504 = vmatpush1.msra.mxu0 %v467
    %505 = vmatprep.subr.mxu0 0.0
    %506 = vmatpush1.msra.mxu0 %v466
    %507 = vmatprep.subr.mxu0 0.0
    %508 = vmatpush1.msra.mxu0 %v465
    %509 = vmatprep.subr.mxu0 0.0
    %510 = vmatpush1.msra.mxu0 %v464
    %511 = vmatprep.subr.mxu0 0.0
    %512 = vmatpush1.msra.mxu0 %v463
    %513 = vmatprep.subr.mxu0 0.0
    %514 = vmatpush1.msra.mxu0 %v462
    %515 = vmatprep.subr.mxu0 0.0
    %516 = vmatpush2.msra.mxu0 0.0
    %517 = vmatprep.subr.mxu0 0.0
    %518 = vmatpush2.msra.mxu0 0.0
    %519 = vmatprep.subr.mxu0 0.0
    %520 = vmatpush2.msra.mxu0 0.0
    %521 = vmatprep.subr.mxu0 0.0
    %522 = vmatpush2.msra.mxu0 0.0
    %523 = vmatprep.subr.mxu0 0.0
    %524 = vmatpush2.msra.mxu0 0.0
    %525 = vmatprep.subr.mxu0 0.0
    %526 = vmatpush2.msra.mxu0 0.0
    %527 = vmatprep.subr.mxu0 0.0
    %528 = vmatpush2.msra.mxu0 0.0
    %529 = vmatprep.subr.mxu0 0.0
    %530 = vmatpush2.msra.mxu0 0.0
    %531 = vmatprep.subr.mxu0 0.0
    %532 = vmatpush2.msra.mxu0 0.0
    %533 = vmatprep.subr.mxu0 0.0
    %534 = vmatpush2.msra.mxu0 0.0
    %535 = vmatprep.subr.mxu0 0.0
    %536 = vmatpush2.msra.mxu0 0.0
    %537 = vmatprep.subr.mxu0 0.0
    %538 = vmatpush2.msra.mxu0 0.0
    %539 = vmatprep.subr.mxu0 0.0
    %540 = vmatpush2.msra.mxu0 0.0
    %541 = vmatprep.subr.mxu0 0.0
    %542 = vmatpush2.msra.mxu0 0.0
    %543 = vmatprep.subr.mxu0 0.0
    %544 = vmatpush2.msra.mxu0 0.0
    %545 = vmatprep.subr.mxu0 0.0
    %546 = vmatpush2.msra.mxu0 0.0
    %547 = vmatprep.mubr.f32.mxu0 0.0
    %548 = vmatmul.mubr.f32.gmra.mxu0 %v461
    %v549 = vpop.f32.mrf.mxu0
    %v550 = vadd.f32 %v482, %v549
    %v551 = vpop.f32.mrf.mxu0
    %552 = vdwg.mxu0
    %v553 = vmax.f32 %v550, 0.0
    %v554 = vld [vmem:[#allocation7] sm:$0xff]
    %v555 = vld [vmem:[#allocation7 + $0x8] sm:$0xff]
    %v556 = vld [vmem:[#allocation7 + $0x10] sm:$0xff]
    %v557 = vld [vmem:[#allocation7 + $0x18] sm:$0xff]
    %v558 = vld [vmem:[#allocation7 + $0x20] sm:$0xff]
    %v559 = vld [vmem:[#allocation7 + $0x28] sm:$0xff]
    %v560 = vld [vmem:[#allocation7 + $0x30] sm:$0xff]
    %v561 = vld [vmem:[#allocation7 + $0x38] sm:$0xff]
    %v562 = vld [vmem:[#allocation7 + $0x40] sm:$0xff]
    %v563 = vld [vmem:[#allocation7 + $0x48] sm:$0xff]
    %v564 = vld [vmem:[#allocation7 + $0x50] sm:$0xff]
    %v565 = vld [vmem:[#allocation7 + $0x58] sm:$0xff]
    %v566 = vld [vmem:[#allocation7 + $0x60] sm:$0xff]
    %v567 = vld [vmem:[#allocation7 + $0x68] sm:$0xff]
    %v568 = vld [vmem:[#allocation7 + $0x70] sm:$0xff]
    %v569 = vld [vmem:[#allocation7 + $0x78] sm:$0xff]
    %v570 = vld [vmem:[%s7 + $0x5] sm:$0x1]
    %v571 = vlaneseq
    %v572 = vshrl.u32 %v571, 7
    %v573 = vsub.s32 0, %v572
    %v574 = vrot.slane %v570, %v573
    %575 = vmatprep.subr.mxu0 0.0
    %576 = vmatpush1.msra.mxu0 %v569
    %577 = vmatprep.subr.mxu0 0.0
    %578 = vmatpush1.msra.mxu0 %v568
    %579 = vmatprep.subr.mxu0 0.0
    %580 = vmatpush1.msra.mxu0 %v567
    %581 = vmatprep.subr.mxu0 0.0
    %582 = vmatpush1.msra.mxu0 %v566
    %583 = vmatprep.subr.mxu0 0.0
    %584 = vmatpush1.msra.mxu0 %v565
    %585 = vmatprep.subr.mxu0 0.0
    %586 = vmatpush1.msra.mxu0 %v564
    %587 = vmatprep.subr.mxu0 0.0
    %588 = vmatpush1.msra.mxu0 %v563
    %589 = vmatprep.subr.mxu0 0.0
    %590 = vmatpush1.msra.mxu0 %v562
    %591 = vmatprep.subr.mxu0 0.0
    %592 = vmatpush1.msra.mxu0 %v561
    %593 = vmatprep.subr.mxu0 0.0
    %594 = vmatpush1.msra.mxu0 %v560
    %595 = vmatprep.subr.mxu0 0.0
    %596 = vmatpush1.msra.mxu0 %v559
    %597 = vmatprep.subr.mxu0 0.0
    %598 = vmatpush1.msra.mxu0 %v558
    %599 = vmatprep.subr.mxu0 0.0
    %600 = vmatpush1.msra.mxu0 %v557
    %601 = vmatprep.subr.mxu0 0.0
    %602 = vmatpush1.msra.mxu0 %v556
    %603 = vmatprep.subr.mxu0 0.0
    %604 = vmatpush1.msra.mxu0 %v555
    %605 = vmatprep.subr.mxu0 0.0
    %606 = vmatpush1.msra.mxu0 %v554
    %607 = vmatprep.subr.mxu0 0.0
    %608 = vmatpush2.msra.mxu0 0.0
    %609 = vmatprep.subr.mxu0 0.0
    %610 = vmatpush2.msra.mxu0 0.0
    %611 = vmatprep.subr.mxu0 0.0
    %612 = vmatpush2.msra.mxu0 0.0
    %613 = vmatprep.subr.mxu0 0.0
    %614 = vmatpush2.msra.mxu0 0.0
    %615 = vmatprep.subr.mxu0 0.0
    %616 = vmatpush2.msra.mxu0 0.0
    %617 = vmatprep.subr.mxu0 0.0
    %618 = vmatpush2.msra.mxu0 0.0
    %619 = vmatprep.subr.mxu0 0.0
    %620 = vmatpush2.msra.mxu0 0.0
    %621 = vmatprep.subr.mxu0 0.0
    %622 = vmatpush2.msra.mxu0 0.0
    %623 = vmatprep.subr.mxu0 0.0
    %624 = vmatpush2.msra.mxu0 0.0
    %625 = vmatprep.subr.mxu0 0.0
    %626 = vmatpush2.msra.mxu0 0.0
    %627 = vmatprep.subr.mxu0 0.0
    %628 = vmatpush2.msra.mxu0 0.0
    %629 = vmatprep.subr.mxu0 0.0
    %630 = vmatpush2.msra.mxu0 0.0
    %631 = vmatprep.subr.mxu0 0.0
    %632 = vmatpush2.msra.mxu0 0.0
    %633 = vmatprep.subr.mxu0 0.0
    %634 = vmatpush2.msra.mxu0 0.0
    %635 = vmatprep.subr.mxu0 0.0
    %636 = vmatpush2.msra.mxu0 0.0
    %637 = vmatprep.subr.mxu0 0.0
    %638 = vmatpush2.msra.mxu0 0.0
    %639 = vmatprep.mubr.f32.mxu0 0.0
    %640 = vmatmul.mubr.f32.gmra.mxu0 %v553
    %v641 = vpop.f32.mrf.mxu0
    %v642 = vadd.f32 %v574, %v641
    %v643 = vpop.f32.mrf.mxu0
    %644 = vdwg.mxu0
    %v645 = vadd.f32 %v642, %v281
    %v646 = vadd.f32 %v645, %v287
    %647 = vst [vmem:[%s8] sm:$0xff] %v646
    // Predicated region
    $region50: #{linear_vae_forward.1} parent=1 // pred_check
      _
    $region51: #{linear_vae_forward.1} parent=1 // pred_check_branch
      %649 = sbr.rel (0) target = $region53
    $region52: #{linear_vae_forward.1} parent=1 // pred_region
      _
    $region53: #{linear_vae_forward.1} parent=1 // pred_fallthru
      _
    // Predicated region
    $region54: #{linear_vae_forward.1} parent=1 // pred_check
      _
    $region55: #{linear_vae_forward.1} parent=1 // pred_check_branch
      %651 = sbr.rel (0) target = $region57
    $region56: #{linear_vae_forward.1} parent=1 // pred_region
      _
    $region57: #{linear_vae_forward.1} parent=1 // pred_fallthru
      _
    %652 = vsyncpa [#allocation3], 1
    %653 = vsyncpa [#allocation5], 1
    %654 = vsyncpa [#allocation8], 1

</llo_original>
